<compile_context>
chip_gen: v7x
topology: tpu7x:2x2x1
jax: 0.10.0
libtpu: 0.0.40
codegen_flags: <defaults>
</compile_context>

<pallas_src>
import jax
import jax.numpy as jnp
from jax.experimental import pallas as pl
from jax.experimental.pallas import tpu as pltpu


def _logreg_kernel(x_ref, w_ref, b_ref, o_ref):
    # x_ref: [TB, F] VMEM  (batch on sublanes, features on lanes; F = 17)
    # w_ref: [1, F]  VMEM  (resident weight row; sublane-broadcast by the VPU)
    # b_ref: [1]     SMEM  (scalar bias)
    # o_ref: [TB, 1] VMEM  (one logit column per batch row)
    prod = x_ref[...] * w_ref[...]                              # VPU fmul
    logits = jnp.sum(prod, axis=-1, keepdims=True) + b_ref[0]   # XLU lane reduce over F
    o_ref[...] = jax.nn.sigmoid(logits).astype(o_ref.dtype)     # EUP


def _round_up(x, m):
    return (x + m - 1) // m * m


def _batch_tile_cap():
    """Per-generation batch-tile cap (sublane rows per grid step).

    Footprint per step is ~tb * 128 lanes * 4 B for the x block and the same
    again for the (tb, 1) output block (lane dims pad to 128 in VMEM), each
    double-buffered.  8192 -> ~17 MB, 16384 -> ~34 MB: comfortably inside
    128 MiB (v5e/v6e) and 64 MiB (v7x) physical VMEM with an explicit limit.
    """
    try:
        kind = jax.devices()[0].device_kind.lower()
    except Exception:
        kind = ""
    if "v5" in kind or "lite" in kind:
        return 8192
    return 16384  # v6e / v7x / default


def _pick_batch_tile(batch, cap=None):
    """Largest reasonable batch tile (multiple of 8, <= cap).

    Small batches get a single full block (rounded to a sublane multiple).
    Large batches prefer an exact divisor of the 8-rounded batch (no wrapper
    pad copy); otherwise we use the cap and the wrapper pads + slices.
    """
    if cap is None:
        cap = _batch_tile_cap()
    b8 = _round_up(batch, 8)
    if b8 <= cap:
        return b8
    best = 8
    for d in range(cap, 7, -8):          # trace-time search, <= 2048 iters
        if b8 % d == 0:
            best = d
            break
    return best if best >= cap // 2 else cap


def logistic_regression(x, weight, bias):
    """x: [B, F] f32, weight: [O, F] f32 (torch nn.Linear layout), bias: [O] f32 -> [B, O] f32."""
    B, F = x.shape
    O = weight.shape[0]

    tb = _pick_batch_tile(B)
    b_pad = _round_up(B, tb)
    if b_pad != B:
        # Pad awkward batch sizes instead of one giant full-extent block.
        x = jnp.pad(x, ((0, b_pad - B), (0, 0)))
    grid = (b_pad // tb,)

    # VMEM budget: x block + out block, each lane-padded to 128 and double-buffered.
    blk_bytes = tb * 128 * 4
    vmem_limit = int(2 * (blk_bytes + blk_bytes) + 8 * 128 * 4 + (8 << 20))

    cost = pl.CostEstimate(
        flops=2 * B * F + B,
        transcendentals=B,
        bytes_accessed=B * F * 4 + B * O * 4 + O * F * 4 + O * 4,
    )

    out = pl.pallas_call(
        _logreg_kernel,
        out_shape=jax.ShapeDtypeStruct((b_pad, O), jnp.float32),
        grid_spec=pltpu.PrefetchScalarGridSpec(
            num_scalar_prefetch=0,
            grid=grid,
            in_specs=[
                pl.BlockSpec((tb, F), lambda i: (i, 0)),            # native [B, F] batch tile
                pl.BlockSpec((O, F), lambda i: (0, 0)),             # resident weight row
                pl.BlockSpec(memory_space=pltpu.MemorySpace.SMEM),  # scalar bias
            ],
            out_specs=pl.BlockSpec((tb, O), lambda i: (i, 0)),
        ),
        compiler_params=pltpu.CompilerParams(
            dimension_semantics=("parallel",),   # batch tiles independent (2 TCs on v7x)
            vmem_limit_bytes=vmem_limit,
        ),
        cost_estimate=cost,
    )(x, weight, bias.reshape(O))

    return out[:B] if b_pad != B else out


if __name__ == "__main__":
    key = jax.random.PRNGKey(0)
    k_x, k_w, k_b = jax.random.split(key, 3)

    B, F, O = 256, 17, 1  # small demo batch

    # Deterministic init mimicking torch nn.Linear: U(-1/sqrt(F), 1/sqrt(F))
    bound = 1.0 / jnp.sqrt(jnp.float32(F))
    weight = jax.random.uniform(k_w, (O, F), jnp.float32, -bound, bound)
    bias = jax.random.uniform(k_b, (O,), jnp.float32, -bound, bound)
    x = jax.random.normal(k_x, (B, F), jnp.float32)

    out = logistic_regression(x, weight, bias)
    out = jax.block_until_ready(out)

    # Reference check in plain JAX
    ref = jax.nn.sigmoid(x @ weight.T + bias)
    assert out.shape == (B, O)
    assert jnp.allclose(out, ref, atol=1e-5, rtol=1e-5)

    print("KERNEL_OK")
</pallas_src>

<mosaic_0001>
module attributes {stable_mosaic.version = 11 : i64} {
  func.func @_logreg_kernel(%arg0: i32, %arg1: memref<256x17xf32, #tpu.memory_space<vmem>>, %arg2: memref<1x17xf32, #tpu.memory_space<vmem>>, %arg3: memref<1xf32, #tpu.memory_space<smem>>, %arg4: memref<256x1xf32, #tpu.memory_space<vmem>>) attributes {dimension_semantics = [#tpu.dimension_semantics<parallel>], iteration_bounds = array<i64: 1>, scalar_prefetch = 0 : i64, scratch_operands = 0 : i64, tpu.core_type = #tpu.core_type<tc>, window_params = [{transform_indices = @transform_0, window_bounds = array<i64: 256, 17>}, {pipeline_mode = #tpu.pipeline_mode<synchronous>, transform_indices = @transform_1, window_bounds = array<i64: 1, 17>}, {transform_indices = @transform_2, window_bounds = array<i64: 1>}, {transform_indices = @transform_3, window_bounds = array<i64: 256, 1>}]} {
    %c0 = arith.constant 0 : index
    %c0_0 = arith.constant 0 : index
    %0 = vector.load %arg1[%c0, %c0_0] : memref<256x17xf32, #tpu.memory_space<vmem>>, vector<256x17xf32>
    %c0_1 = arith.constant 0 : index
    %c0_2 = arith.constant 0 : index
    %1 = vector.load %arg2[%c0_1, %c0_2] : memref<1x17xf32, #tpu.memory_space<vmem>>, vector<1x17xf32>
    %2 = vector.broadcast %1 : vector<1x17xf32> to vector<256x17xf32>
    %3 = arith.mulf %0, %2 : vector<256x17xf32>
    %cst = arith.constant dense<0.000000e+00> : vector<256xf32>
    %4 = vector.multi_reduction <add>, %3, %cst [1] : vector<256x17xf32> to vector<256xf32>
    %5 = vector.shape_cast %4 : vector<256xf32> to vector<256x1xf32>
    %c0_3 = arith.constant 0 : index
    %6 = memref.load %arg3[%c0_3] : memref<1xf32, #tpu.memory_space<smem>>
    %7 = vector.broadcast %6 : f32 to vector<256x1xf32>
    %8 = arith.addf %5, %7 : vector<256x1xf32>
    %9 = arith.negf %8 : vector<256x1xf32>
    %10 = math.exp %9 : vector<256x1xf32>
    %cst_4 = arith.constant 1.000000e+00 : f32
    %11 = vector.broadcast %cst_4 : f32 to vector<256x1xf32>
    %12 = arith.addf %11, %10 : vector<256x1xf32>
    %13 = arith.divf %11, %12 : vector<256x1xf32>
    %c0_5 = arith.constant 0 : index
    %c0_6 = arith.constant 0 : index
    %14 = vector.load %arg4[%c0_5, %c0_6] : memref<256x1xf32, #tpu.memory_space<vmem>>, vector<256x1xf32>
    tpu.vector_store %arg4[%c0_5, %c0_6], %13 {strides = array<i32>} : memref<256x1xf32, #tpu.memory_space<vmem>>, vector<256x1xf32>,
    return
  }
  func.func @transform_0(%arg0: i32) -> (i32, i32) {
    %c0_i32 = arith.constant 0 : i32
    %c0_i32_0 = arith.constant 0 : i32
    return %arg0, %c0_i32 : i32, i32
  }
  func.func @transform_1(%arg0: i32) -> (i32, i32) {
    %c0_i32 = arith.constant 0 : i32
    %c0_i32_0 = arith.constant 0 : i32
    %c0_i32_1 = arith.constant 0 : i32
    return %c0_i32, %c0_i32_0 : i32, i32
  }
  func.func @transform_2(%arg0: i32) -> i32 {
    %c0_i32 = arith.constant 0 : i32
    %c0_i32_0 = arith.constant 0 : i32
    return %c0_i32 : i32
  }
  func.func @transform_3(%arg0: i32) -> (i32, i32) {
    %c0_i32 = arith.constant 0 : i32
    %c0_i32_0 = arith.constant 0 : i32
    return %arg0, %c0_i32 : i32, i32
  }
}

</mosaic_0001>

<llo_original>
// kernel: tpu_custom_call.1
$region0: #{tpu_custom_call.1}
  #allocation0 [shape = 'u32[]', space=smem, size = 0x4, offset = 0x4, fixed_abs, tag = 'smem constant byte address 0x4 - core index']
  #allocation1 [shape = 'u32[144,128]{1,0:T(1,128)}', space=vmem, size = 0x12000, scoped, tag = 'internal scratch']
  #allocation2 [shape = 'f32[1]{0:T(128)S(6)}', space=smem, size = 0x200, scoped, tag = 'scoped memory for tpu_custom_call.1']
  %s0 = inlined_call_operand.vmem [shape: f32[256,17], index: 0, kind: input, shape index: {}]
  %s1 = inlined_call_operand.vmem [shape: f32[1,17], index: 1, kind: input, shape index: {}]
  %s2 = inlined_call_operand.<no memory space> [shape: f32[1], index: 2, kind: input, shape index: {}]
  %s3 = inlined_call_operand.vmem [shape: f32[256,1], index: 3, kind: output, shape index: {}]
  %s4 = sld [smem:[#allocation0]]
  $region22: #{tpu_custom_call.1} parent=0
    _
  %s6 = ssub.s32 1, %s4
  %s7 = scalar_select 0, %s6, %s4
  %8 = sst [smem:[#allocation2]] %s2
  // Predicated region
  $region2: #{tpu_custom_call.1} parent=0 // pred_check
    _
  $region3: #{tpu_custom_call.1} parent=0 // pred_check_branch
    %10 = sbr.rel (0) target = $region5
  $region4: #{tpu_custom_call.1} parent=0 // pred_region
    _
  $region5: #{tpu_custom_call.1} parent=0 // pred_fallthru
    _
  // Predicated region
  $region6: #{tpu_custom_call.1} parent=0 // pred_check
    _
  $region7: #{tpu_custom_call.1} parent=0 // pred_check_branch
    %12 = sbr.rel (0) target = $region9
  $region8: #{tpu_custom_call.1} parent=0 // pred_region
    _
  $region9: #{tpu_custom_call.1} parent=0 // pred_fallthru
    _
  // Predicated region
  $region10: #{tpu_custom_call.1} parent=0 // pred_check
    _
  $region11: #{tpu_custom_call.1} parent=0 // pred_check_branch
    %14 = sbr.rel (0) target = $region13
  $region12: #{tpu_custom_call.1} parent=0 // pred_region
    _
  $region13: #{tpu_custom_call.1} parent=0 // pred_fallthru
    _
  %v15 = vld [vmem:[%s0] sm:$0xff]
  %v16 = vld [vmem:[%s0 + $0x8] sm:$0xff]
  %v17 = vld [vmem:[%s0 + $0x10] sm:$0xff]
  %v18 = vld [vmem:[%s0 + $0x18] sm:$0xff]
  %v19 = vld [vmem:[%s0 + $0x20] sm:$0xff]
  %v20 = vld [vmem:[%s0 + $0x28] sm:$0xff]
  %v21 = vld [vmem:[%s0 + $0x30] sm:$0xff]
  %v22 = vld [vmem:[%s0 + $0x38] sm:$0xff]
  %v23 = vld [vmem:[%s0 + $0x40] sm:$0xff]
  %v24 = vld [vmem:[%s0 + $0x48] sm:$0xff]
  %v25 = vld [vmem:[%s0 + $0x50] sm:$0xff]
  %v26 = vld [vmem:[%s0 + $0x58] sm:$0xff]
  %v27 = vld [vmem:[%s0 + $0x60] sm:$0xff]
  %v28 = vld [vmem:[%s0 + $0x68] sm:$0xff]
  %v29 = vld [vmem:[%s0 + $0x70] sm:$0xff]
  %v30 = vld [vmem:[%s0 + $0x78] sm:$0xff]
  %v31 = vld [vmem:[%s0 + $0x80] sm:$0xff]
  %v32 = vld [vmem:[%s0 + $0x88] sm:$0xff]
  %v33 = vld [vmem:[%s0 + $0x90] sm:$0xff]
  %v34 = vld [vmem:[%s0 + $0x98] sm:$0xff]
  %v35 = vld [vmem:[%s0 + $0xa0] sm:$0xff]
  %v36 = vld [vmem:[%s0 + $0xa8] sm:$0xff]
  %v37 = vld [vmem:[%s0 + $0xb0] sm:$0xff]
  %v38 = vld [vmem:[%s0 + $0xb8] sm:$0xff]
  %v39 = vld [vmem:[%s0 + $0xc0] sm:$0xff]
  %v40 = vld [vmem:[%s0 + $0xc8] sm:$0xff]
  %v41 = vld [vmem:[%s0 + $0xd0] sm:$0xff]
  %v42 = vld [vmem:[%s0 + $0xd8] sm:$0xff]
  %v43 = vld [vmem:[%s0 + $0xe0] sm:$0xff]
  %v44 = vld [vmem:[%s0 + $0xe8] sm:$0xff]
  %v45 = vld [vmem:[%s0 + $0xf0] sm:$0xff]
  %v46 = vld [vmem:[%s0 + $0xf8] sm:$0xff]
  %v47 = vld [vmem:[%s1] sm:$0x1]
  %v49 = vlaneseq
  %v50 = vshrl.u32 %v49, 7
  %v51 = vsub.s32 0, %v50
  %v52 = vrot.slane %v47, %v51
  %v54 = vmul.f32 %v15, %v52
  %v55 = vmul.f32 %v16, %v52
  %v56 = vmul.f32 %v17, %v52
  %v57 = vmul.f32 %v18, %v52
  %v58 = vmul.f32 %v19, %v52
  %v59 = vmul.f32 %v20, %v52
  %v60 = vmul.f32 %v21, %v52
  %v61 = vmul.f32 %v22, %v52
  %v62 = vmul.f32 %v23, %v52
  %v63 = vmul.f32 %v24, %v52
  %v64 = vmul.f32 %v25, %v52
  %v65 = vmul.f32 %v26, %v52
  %v66 = vmul.f32 %v27, %v52
  %v67 = vmul.f32 %v28, %v52
  %v68 = vmul.f32 %v29, %v52
  %v69 = vmul.f32 %v30, %v52
  %v70 = vmul.f32 %v31, %v52
  %v71 = vmul.f32 %v32, %v52
  %v72 = vmul.f32 %v33, %v52
  %v73 = vmul.f32 %v34, %v52
  %v74 = vmul.f32 %v35, %v52
  %v75 = vmul.f32 %v36, %v52
  %v76 = vmul.f32 %v37, %v52
  %v77 = vmul.f32 %v38, %v52
  %v78 = vmul.f32 %v39, %v52
  %v79 = vmul.f32 %v40, %v52
  %v80 = vmul.f32 %v41, %v52
  %v81 = vmul.f32 %v42, %v52
  %v82 = vmul.f32 %v43, %v52
  %v83 = vmul.f32 %v44, %v52
  %v84 = vmul.f32 %v45, %v52
  %v85 = vmul.f32 %v46, %v52
  %vm86 = vcmask 138240
  %v87 = vsel %vm86, %v54, 0.0
  %88 = vadd.xlane.f32.xlu0 %v87
  %v89 = vpop.xlane.xlu0 %88
  %v90 = vsel %vm86, %v55, 0.0
  %91 = vadd.xlane.f32.xlu0 %v90
  %v92 = vpop.xlane.xlu0 %91
  %v93 = vsel %vm86, %v56, 0.0
  %94 = vadd.xlane.f32.xlu0 %v93
  %v95 = vpop.xlane.xlu0 %94
  %v96 = vsel %vm86, %v57, 0.0
  %97 = vadd.xlane.f32.xlu0 %v96
  %v98 = vpop.xlane.xlu0 %97
  %v99 = vsel %vm86, %v58, 0.0
  %100 = vadd.xlane.f32.xlu0 %v99
  %v101 = vpop.xlane.xlu0 %100
  %v102 = vsel %vm86, %v59, 0.0
  %103 = vadd.xlane.f32.xlu0 %v102
  %v104 = vpop.xlane.xlu0 %103
  %v105 = vsel %vm86, %v60, 0.0
  %106 = vadd.xlane.f32.xlu0 %v105
  %v107 = vpop.xlane.xlu0 %106
  %v108 = vsel %vm86, %v61, 0.0
  %109 = vadd.xlane.f32.xlu0 %v108
  %v110 = vpop.xlane.xlu0 %109
  %v111 = vsel %vm86, %v62, 0.0
  %112 = vadd.xlane.f32.xlu0 %v111
  %v113 = vpop.xlane.xlu0 %112
  %v114 = vsel %vm86, %v63, 0.0
  %115 = vadd.xlane.f32.xlu0 %v114
  %v116 = vpop.xlane.xlu0 %115
  %v117 = vsel %vm86, %v64, 0.0
  %118 = vadd.xlane.f32.xlu0 %v117
  %v119 = vpop.xlane.xlu0 %118
  %v120 = vsel %vm86, %v65, 0.0
  %121 = vadd.xlane.f32.xlu0 %v120
  %v122 = vpop.xlane.xlu0 %121
  %v123 = vsel %vm86, %v66, 0.0
  %124 = vadd.xlane.f32.xlu0 %v123
  %v125 = vpop.xlane.xlu0 %124
  %v126 = vsel %vm86, %v67, 0.0
  %127 = vadd.xlane.f32.xlu0 %v126
  %v128 = vpop.xlane.xlu0 %127
  %v129 = vsel %vm86, %v68, 0.0
  %130 = vadd.xlane.f32.xlu0 %v129
  %v131 = vpop.xlane.xlu0 %130
  %v132 = vsel %vm86, %v69, 0.0
  %133 = vadd.xlane.f32.xlu0 %v132
  %v134 = vpop.xlane.xlu0 %133
  %v135 = vsel %vm86, %v70, 0.0
  %136 = vadd.xlane.f32.xlu0 %v135
  %v137 = vpop.xlane.xlu0 %136
  %v138 = vsel %vm86, %v71, 0.0
  %139 = vadd.xlane.f32.xlu0 %v138
  %v140 = vpop.xlane.xlu0 %139
  %v141 = vsel %vm86, %v72, 0.0
  %142 = vadd.xlane.f32.xlu0 %v141
  %v143 = vpop.xlane.xlu0 %142
  %v144 = vsel %vm86, %v73, 0.0
  %145 = vadd.xlane.f32.xlu0 %v144
  %v146 = vpop.xlane.xlu0 %145
  %v147 = vsel %vm86, %v74, 0.0
  %148 = vadd.xlane.f32.xlu0 %v147
  %v149 = vpop.xlane.xlu0 %148
  %v150 = vsel %vm86, %v75, 0.0
  %151 = vadd.xlane.f32.xlu0 %v150
  %v152 = vpop.xlane.xlu0 %151
  %v153 = vsel %vm86, %v76, 0.0
  %154 = vadd.xlane.f32.xlu0 %v153
  %v155 = vpop.xlane.xlu0 %154
  %v156 = vsel %vm86, %v77, 0.0
  %157 = vadd.xlane.f32.xlu0 %v156
  %v158 = vpop.xlane.xlu0 %157
  %v159 = vsel %vm86, %v78, 0.0
  %160 = vadd.xlane.f32.xlu0 %v159
  %v161 = vpop.xlane.xlu0 %160
  %v162 = vsel %vm86, %v79, 0.0
  %163 = vadd.xlane.f32.xlu0 %v162
  %v164 = vpop.xlane.xlu0 %163
  %v165 = vsel %vm86, %v80, 0.0
  %166 = vadd.xlane.f32.xlu0 %v165
  %v167 = vpop.xlane.xlu0 %166
  %v168 = vsel %vm86, %v81, 0.0
  %169 = vadd.xlane.f32.xlu0 %v168
  %v170 = vpop.xlane.xlu0 %169
  %v171 = vsel %vm86, %v82, 0.0
  %172 = vadd.xlane.f32.xlu0 %v171
  %v173 = vpop.xlane.xlu0 %172
  %v174 = vsel %vm86, %v83, 0.0
  %175 = vadd.xlane.f32.xlu0 %v174
  %v176 = vpop.xlane.xlu0 %175
  %v177 = vsel %vm86, %v84, 0.0
  %178 = vadd.xlane.f32.xlu0 %v177
  %v179 = vpop.xlane.xlu0 %178
  %v180 = vsel %vm86, %v85, 0.0
  %181 = vadd.xlane.f32.xlu0 %v180
  %v182 = vpop.xlane.xlu0 %181
  %s183 = sld [smem:[#allocation2]]
  %v184 = vstv %s183
  %v185 = vadd.f32 %v89, %v184
  %v186 = vadd.f32 %v92, %v184
  %v187 = vadd.f32 %v95, %v184
  %v188 = vadd.f32 %v98, %v184
  %v189 = vadd.f32 %v101, %v184
  %v190 = vadd.f32 %v104, %v184
  %v191 = vadd.f32 %v107, %v184
  %v192 = vadd.f32 %v110, %v184
  %v193 = vadd.f32 %v113, %v184
  %v194 = vadd.f32 %v116, %v184
  %v195 = vadd.f32 %v119, %v184
  %v196 = vadd.f32 %v122, %v184
  %v197 = vadd.f32 %v125, %v184
  %v198 = vadd.f32 %v128, %v184
  %v199 = vadd.f32 %v131, %v184
  %v200 = vadd.f32 %v134, %v184
  %v201 = vadd.f32 %v137, %v184
  %v202 = vadd.f32 %v140, %v184
  %v203 = vadd.f32 %v143, %v184
  %v204 = vadd.f32 %v146, %v184
  %v205 = vadd.f32 %v149, %v184
  %v206 = vadd.f32 %v152, %v184
  %v207 = vadd.f32 %v155, %v184
  %v208 = vadd.f32 %v158, %v184
  %v209 = vadd.f32 %v161, %v184
  %v210 = vadd.f32 %v164, %v184
  %v211 = vadd.f32 %v167, %v184
  %v212 = vadd.f32 %v170, %v184
  %v213 = vadd.f32 %v173, %v184
  %v214 = vadd.f32 %v176, %v184
  %v215 = vadd.f32 %v179, %v184
  %v216 = vadd.f32 %v182, %v184
  %v217 = vxor.u32 %v185, 2147483648
  %v218 = vxor.u32 %v186, 2147483648
  %v219 = vxor.u32 %v187, 2147483648
  %v220 = vxor.u32 %v188, 2147483648
  %v221 = vxor.u32 %v189, 2147483648
  %v222 = vxor.u32 %v190, 2147483648
  %v223 = vxor.u32 %v191, 2147483648
  %v224 = vxor.u32 %v192, 2147483648
  %v225 = vxor.u32 %v193, 2147483648
  %v226 = vxor.u32 %v194, 2147483648
  %v227 = vxor.u32 %v195, 2147483648
  %v228 = vxor.u32 %v196, 2147483648
  %v229 = vxor.u32 %v197, 2147483648
  %v230 = vxor.u32 %v198, 2147483648
  %v231 = vxor.u32 %v199, 2147483648
  %v232 = vxor.u32 %v200, 2147483648
  %v233 = vxor.u32 %v201, 2147483648
  %v234 = vxor.u32 %v202, 2147483648
  %v235 = vxor.u32 %v203, 2147483648
  %v236 = vxor.u32 %v204, 2147483648
  %v237 = vxor.u32 %v205, 2147483648
  %v238 = vxor.u32 %v206, 2147483648
  %v239 = vxor.u32 %v207, 2147483648
  %v240 = vxor.u32 %v208, 2147483648
  %v241 = vxor.u32 %v209, 2147483648
  %v242 = vxor.u32 %v210, 2147483648
  %v243 = vxor.u32 %v211, 2147483648
  %v244 = vxor.u32 %v212, 2147483648
  %v245 = vxor.u32 %v213, 2147483648
  %v246 = vxor.u32 %v214, 2147483648
  %v247 = vxor.u32 %v215, 2147483648
  %v248 = vxor.u32 %v216, 2147483648
  %v249 = vmul.f32 %v217, 1.442695
  %v250 = vpow.pop %v249
  %v251 = vmul.f32 %v218, 1.442695
  %v252 = vpow.pop %v251
  %v253 = vmul.f32 %v219, 1.442695
  %v254 = vpow.pop %v253
  %v255 = vmul.f32 %v220, 1.442695
  %v256 = vpow.pop %v255
  %v257 = vmul.f32 %v221, 1.442695
  %v258 = vpow.pop %v257
  %v259 = vmul.f32 %v222, 1.442695
  %v260 = vpow.pop %v259
  %v261 = vmul.f32 %v223, 1.442695
  %v262 = vpow.pop %v261
  %v263 = vmul.f32 %v224, 1.442695
  %v264 = vpow.pop %v263
  %v265 = vmul.f32 %v225, 1.442695
  %v266 = vpow.pop %v265
  %v267 = vmul.f32 %v226, 1.442695
  %v268 = vpow.pop %v267
  %v269 = vmul.f32 %v227, 1.442695
  %v270 = vpow.pop %v269
  %v271 = vmul.f32 %v228, 1.442695
  %v272 = vpow.pop %v271
  %v273 = vmul.f32 %v229, 1.442695
  %v274 = vpow.pop %v273
  %v275 = vmul.f32 %v230, 1.442695
  %v276 = vpow.pop %v275
  %v277 = vmul.f32 %v231, 1.442695
  %v278 = vpow.pop %v277
  %v279 = vmul.f32 %v232, 1.442695
  %v280 = vpow.pop %v279
  %v281 = vmul.f32 %v233, 1.442695
  %v282 = vpow.pop %v281
  %v283 = vmul.f32 %v234, 1.442695
  %v284 = vpow.pop %v283
  %v285 = vmul.f32 %v235, 1.442695
  %v286 = vpow.pop %v285
  %v287 = vmul.f32 %v236, 1.442695
  %v288 = vpow.pop %v287
  %v289 = vmul.f32 %v237, 1.442695
  %v290 = vpow.pop %v289
  %v291 = vmul.f32 %v238, 1.442695
  %v292 = vpow.pop %v291
  %v293 = vmul.f32 %v239, 1.442695
  %v294 = vpow.pop %v293
  %v295 = vmul.f32 %v240, 1.442695
  %v296 = vpow.pop %v295
  %v297 = vmul.f32 %v241, 1.442695
  %v298 = vpow.pop %v297
  %v299 = vmul.f32 %v242, 1.442695
  %v300 = vpow.pop %v299
  %v301 = vmul.f32 %v243, 1.442695
  %v302 = vpow.pop %v301
  %v303 = vmul.f32 %v244, 1.442695
  %v304 = vpow.pop %v303
  %v305 = vmul.f32 %v245, 1.442695
  %v306 = vpow.pop %v305
  %v307 = vmul.f32 %v246, 1.442695
  %v308 = vpow.pop %v307
  %v309 = vmul.f32 %v247, 1.442695
  %v310 = vpow.pop %v309
  %v311 = vmul.f32 %v248, 1.442695
  %v312 = vpow.pop %v311
  %v313 = vadd.f32 %v250, 1.0
  %v314 = vadd.f32 %v252, 1.0
  %v315 = vadd.f32 %v254, 1.0
  %v316 = vadd.f32 %v256, 1.0
  %v317 = vadd.f32 %v258, 1.0
  %v318 = vadd.f32 %v260, 1.0
  %v319 = vadd.f32 %v262, 1.0
  %v320 = vadd.f32 %v264, 1.0
  %v321 = vadd.f32 %v266, 1.0
  %v322 = vadd.f32 %v268, 1.0
  %v323 = vadd.f32 %v270, 1.0
  %v324 = vadd.f32 %v272, 1.0
  %v325 = vadd.f32 %v274, 1.0
  %v326 = vadd.f32 %v276, 1.0
  %v327 = vadd.f32 %v278, 1.0
  %v328 = vadd.f32 %v280, 1.0
  %v329 = vadd.f32 %v282, 1.0
  %v330 = vadd.f32 %v284, 1.0
  %v331 = vadd.f32 %v286, 1.0
  %v332 = vadd.f32 %v288, 1.0
  %v333 = vadd.f32 %v290, 1.0
  %v334 = vadd.f32 %v292, 1.0
  %v335 = vadd.f32 %v294, 1.0
  %v336 = vadd.f32 %v296, 1.0
  %v337 = vadd.f32 %v298, 1.0
  %v338 = vadd.f32 %v300, 1.0
  %v339 = vadd.f32 %v302, 1.0
  %v340 = vadd.f32 %v304, 1.0
  %v341 = vadd.f32 %v306, 1.0
  %v342 = vadd.f32 %v308, 1.0
  %v343 = vadd.f32 %v310, 1.0
  %v344 = vadd.f32 %v312, 1.0
  %v345 = vrcp.pop %v313
  %v346 = vmul.f32 1.0, %v345
  %v347 = vrcp.pop %v314
  %v348 = vmul.f32 1.0, %v347
  %v349 = vrcp.pop %v315
  %v350 = vmul.f32 1.0, %v349
  %v351 = vrcp.pop %v316
  %v352 = vmul.f32 1.0, %v351
  %v353 = vrcp.pop %v317
  %v354 = vmul.f32 1.0, %v353
  %v355 = vrcp.pop %v318
  %v356 = vmul.f32 1.0, %v355
  %v357 = vrcp.pop %v319
  %v358 = vmul.f32 1.0, %v357
  %v359 = vrcp.pop %v320
  %v360 = vmul.f32 1.0, %v359
  %v361 = vrcp.pop %v321
  %v362 = vmul.f32 1.0, %v361
  %v363 = vrcp.pop %v322
  %v364 = vmul.f32 1.0, %v363
  %v365 = vrcp.pop %v323
  %v366 = vmul.f32 1.0, %v365
  %v367 = vrcp.pop %v324
  %v368 = vmul.f32 1.0, %v367
  %v369 = vrcp.pop %v325
  %v370 = vmul.f32 1.0, %v369
  %v371 = vrcp.pop %v326
  %v372 = vmul.f32 1.0, %v371
  %v373 = vrcp.pop %v327
  %v374 = vmul.f32 1.0, %v373
  %v375 = vrcp.pop %v328
  %v376 = vmul.f32 1.0, %v375
  %v377 = vrcp.pop %v329
  %v378 = vmul.f32 1.0, %v377
  %v379 = vrcp.pop %v330
  %v380 = vmul.f32 1.0, %v379
  %v381 = vrcp.pop %v331
  %v382 = vmul.f32 1.0, %v381
  %v383 = vrcp.pop %v332
  %v384 = vmul.f32 1.0, %v383
  %v385 = vrcp.pop %v333
  %v386 = vmul.f32 1.0, %v385
  %v387 = vrcp.pop %v334
  %v388 = vmul.f32 1.0, %v387
  %v389 = vrcp.pop %v335
  %v390 = vmul.f32 1.0, %v389
  %v391 = vrcp.pop %v336
  %v392 = vmul.f32 1.0, %v391
  %v393 = vrcp.pop %v337
  %v394 = vmul.f32 1.0, %v393
  %v395 = vrcp.pop %v338
  %v396 = vmul.f32 1.0, %v395
  %v397 = vrcp.pop %v339
  %v398 = vmul.f32 1.0, %v397
  %v399 = vrcp.pop %v340
  %v400 = vmul.f32 1.0, %v399
  %v401 = vrcp.pop %v341
  %v402 = vmul.f32 1.0, %v401
  %v403 = vrcp.pop %v342
  %v404 = vmul.f32 1.0, %v403
  %v405 = vrcp.pop %v343
  %v406 = vmul.f32 1.0, %v405
  %v407 = vrcp.pop %v344
  %v408 = vmul.f32 1.0, %v407
  %vm409 = vcmask 7168
  %410 = vst.msk [vmem:[%s3] sm:$0xff] %vm409, %v346
  %411 = vst.msk [vmem:[%s3 + $0x8] sm:$0xff] %vm409, %v348
  %412 = vst.msk [vmem:[%s3 + $0x10] sm:$0xff] %vm409, %v350
  %413 = vst.msk [vmem:[%s3 + $0x18] sm:$0xff] %vm409, %v352
  %414 = vst.msk [vmem:[%s3 + $0x20] sm:$0xff] %vm409, %v354
  %415 = vst.msk [vmem:[%s3 + $0x28] sm:$0xff] %vm409, %v356
  %416 = vst.msk [vmem:[%s3 + $0x30] sm:$0xff] %vm409, %v358
  %417 = vst.msk [vmem:[%s3 + $0x38] sm:$0xff] %vm409, %v360
  %418 = vst.msk [vmem:[%s3 + $0x40] sm:$0xff] %vm409, %v362
  %419 = vst.msk [vmem:[%s3 + $0x48] sm:$0xff] %vm409, %v364
  %420 = vst.msk [vmem:[%s3 + $0x50] sm:$0xff] %vm409, %v366
  %421 = vst.msk [vmem:[%s3 + $0x58] sm:$0xff] %vm409, %v368
  %422 = vst.msk [vmem:[%s3 + $0x60] sm:$0xff] %vm409, %v370
  %423 = vst.msk [vmem:[%s3 + $0x68] sm:$0xff] %vm409, %v372
  %424 = vst.msk [vmem:[%s3 + $0x70] sm:$0xff] %vm409, %v374
  %425 = vst.msk [vmem:[%s3 + $0x78] sm:$0xff] %vm409, %v376
  %426 = vst.msk [vmem:[%s3 + $0x80] sm:$0xff] %vm409, %v378
  %427 = vst.msk [vmem:[%s3 + $0x88] sm:$0xff] %vm409, %v380
  %428 = vst.msk [vmem:[%s3 + $0x90] sm:$0xff] %vm409, %v382
  %429 = vst.msk [vmem:[%s3 + $0x98] sm:$0xff] %vm409, %v384
  %430 = vst.msk [vmem:[%s3 + $0xa0] sm:$0xff] %vm409, %v386
  %431 = vst.msk [vmem:[%s3 + $0xa8] sm:$0xff] %vm409, %v388
  %432 = vst.msk [vmem:[%s3 + $0xb0] sm:$0xff] %vm409, %v390
  %433 = vst.msk [vmem:[%s3 + $0xb8] sm:$0xff] %vm409, %v392
  %434 = vst.msk [vmem:[%s3 + $0xc0] sm:$0xff] %vm409, %v394
  %435 = vst.msk [vmem:[%s3 + $0xc8] sm:$0xff] %vm409, %v396
  %436 = vst.msk [vmem:[%s3 + $0xd0] sm:$0xff] %vm409, %v398
  %437 = vst.msk [vmem:[%s3 + $0xd8] sm:$0xff] %vm409, %v400
  %438 = vst.msk [vmem:[%s3 + $0xe0] sm:$0xff] %vm409, %v402
  %439 = vst.msk [vmem:[%s3 + $0xe8] sm:$0xff] %vm409, %v404
  %440 = vst.msk [vmem:[%s3 + $0xf0] sm:$0xff] %vm409, %v406
  %441 = vst.msk [vmem:[%s3 + $0xf8] sm:$0xff] %vm409, %v408
  // Predicated region
  $region14: #{tpu_custom_call.1} parent=0 // pred_check
    _
  $region15: #{tpu_custom_call.1} parent=0 // pred_check_branch
    %443 = sbr.rel (0) target = $region17
  $region16: #{tpu_custom_call.1} parent=0 // pred_region
    _
  $region17: #{tpu_custom_call.1} parent=0 // pred_fallthru
    _
  // Predicated region
  $region18: #{tpu_custom_call.1} parent=0 // pred_check
    _
  $region19: #{tpu_custom_call.1} parent=0 // pred_check_branch
    %445 = sbr.rel (0) target = $region21
  $region20: #{tpu_custom_call.1} parent=0 // pred_region
    _
  $region21: #{tpu_custom_call.1} parent=0 // pred_fallthru
    _

</llo_original>
